<compile_context>
chip_gen: v5e
topology: v5e:2x2
jax: 0.10.0
libtpu: 0.0.40
codegen_flags: <defaults>
</compile_context>

<pallas_src>
import jax
import jax.numpy as jnp
from jax.experimental import pallas as pl
from jax.experimental.pallas import tpu as pltpu


def _round_up(x, m):
    return (x + m - 1) // m * m


# ----------------------------------------------------------------------------
# Tiny-shape fast path: single-block VPU kernel (no grid, no MXU, no padding).
# ----------------------------------------------------------------------------
def _small_linear_kernel(x_ref, w_ref, b_ref, o_ref):
    # x: (M, K) VMEM, w: (N, K) VMEM (torch layout), b: (N,) SMEM, o: (M, N).
    # y[:, n] = sum_k x[:, k] * w[n, k] + b[n]   -- pure VPU/XLU work.
    x = x_ref[...].astype(jnp.float32)
    w = w_ref[...].astype(jnp.float32)
    n_out = o_ref.shape[1]
    for n in range(n_out):  # N is tiny and static on this path
        col = jnp.sum(x * w[n : n + 1, :], axis=1, keepdims=True)  # (M, 1)
        o_ref[:, n : n + 1] = (col + b_ref[n]).astype(o_ref.dtype)


def _linear_small(x, w, b):
    M, K = x.shape
    N = w.shape[0]
    itemsize = jnp.dtype(x.dtype).itemsize
    cost = pl.CostEstimate(
        flops=2 * M * K * N,
        transcendentals=0,
        bytes_accessed=(x.size + w.size + b.size + M * N) * itemsize,
    )
    return pl.pallas_call(
        _small_linear_kernel,
        out_shape=jax.ShapeDtypeStruct((M, N), x.dtype),
        in_specs=[
            pl.BlockSpec(memory_space=pltpu.MemorySpace.VMEM),
            pl.BlockSpec(memory_space=pltpu.MemorySpace.VMEM),
            pl.BlockSpec(memory_space=pltpu.MemorySpace.SMEM),  # tiny bias -> SMEM
        ],
        out_specs=pl.BlockSpec(memory_space=pltpu.MemorySpace.VMEM),
        cost_estimate=cost,
    )(x, w, b)


# ----------------------------------------------------------------------------
# Scalable tiled-matmul path (for large layers).
# ----------------------------------------------------------------------------
def _matmul_kernel_noacc(x_ref, w_ref, b_ref, o_ref):
    # x: (tm, tk), w: (tn, tk) torch layout, b: (1, tn), o: (tm, tn) resident
    # across the K grid axis.  No accumulator scratch, no finalize copy.
    k = pl.program_id(2)

    @pl.when(k == 0)
    def _():
        o_ref[...] = jnp.broadcast_to(b_ref[...], o_ref.shape).astype(o_ref.dtype)

    o_ref[...] += jax.lax.dot_general(
        x_ref[...],
        w_ref[...],
        dimension_numbers=(((1,), (1,)), ((), ())),  # contract K of x with K of w
        preferred_element_type=jnp.float32,
    ).astype(o_ref.dtype)


def _matmul_kernel_acc(x_ref, w_ref, b_ref, o_ref, acc_ref):
    # Variant with an f32 VMEM accumulator for low-precision outputs.
    k = pl.program_id(2)

    @pl.when(k == 0)
    def _():
        acc_ref[...] = jnp.zeros_like(acc_ref)

    acc_ref[...] += jax.lax.dot_general(
        x_ref[...],
        w_ref[...],
        dimension_numbers=(((1,), (1,)), ((), ())),
        preferred_element_type=jnp.float32,
    )

    @pl.when(k == pl.num_programs(2) - 1)
    def _():
        o_ref[...] = (acc_ref[...] + b_ref[...]).astype(o_ref.dtype)


def _tile_caps():
    # Per-generation caps: tighter budget when physical VMEM is 64 MiB (v7x),
    # bigger tiles + higher explicit vmem limit when 128 MiB (v5e/v6e).
    vmem_bytes = 64 << 20
    try:
        vmem_bytes = getattr(pltpu.get_tpu_info(), "vmem_capacity_bytes", vmem_bytes)
    except Exception:
        pass
    if vmem_bytes <= (64 << 20):
        return 512, 512, 512, 32 << 20          # v7x-class
    return 512, 1024, 1024, 64 << 20             # v5e / v6e-class


def _linear_tiled(x, w, b):
    M, K = x.shape
    N = w.shape[0]

    tm_cap, tk_cap, tn_cap, vmem_limit = _tile_caps()

    # Sublane-aligned M tile; 256-aligned K/N tiles (MXU width on v6e/v7x).
    tm = min(tm_cap, _round_up(M, 8))
    tk = min(tk_cap, _round_up(K, 256))
    tn = min(tn_cap, _round_up(N, 256))

    M_pad, K_pad, N_pad = _round_up(M, tm), _round_up(K, tk), _round_up(N, tn)

    # Only pad when a dim is not already tile-aligned (avoids the extra HBM
    # read+write of jnp.pad / the output slice whenever possible).
    x_p = x if (M_pad == M and K_pad == K) else jnp.pad(
        x, ((0, M_pad - M), (0, K_pad - K)))
    w_p = w if (N_pad == N and K_pad == K) else jnp.pad(
        w, ((0, N_pad - N), (0, K_pad - K)))
    b_p = (b if N_pad == N else jnp.pad(b, (0, N_pad - N))).reshape(1, N_pad)

    grid = (M_pad // tm, N_pad // tn, K_pad // tk)
    nk = grid[2]

    out_dtype = x.dtype
    use_noacc = (out_dtype == jnp.float32) or (nk == 1)
    kernel = _matmul_kernel_noacc if use_noacc else _matmul_kernel_acc
    scratch = [] if use_noacc else [pltpu.VMEM((tm, tn), jnp.float32)]

    itemsize = jnp.dtype(x.dtype).itemsize
    cost = pl.CostEstimate(
        flops=2 * M * K * N,
        transcendentals=0,
        bytes_accessed=(x.size + w.size + b.size + M * N) * itemsize,
    )

    y_p = pl.pallas_call(
        kernel,
        out_shape=jax.ShapeDtypeStruct((M_pad, N_pad), out_dtype),
        grid_spec=pltpu.PrefetchScalarGridSpec(
            num_scalar_prefetch=0,
            grid=grid,
            in_specs=[
                pl.BlockSpec((tm, tk), lambda i, j, k: (i, k)),
                # W kept in torch (N, K) layout -> no host-side transpose.
                pl.BlockSpec((tn, tk), lambda i, j, k: (j, k)),
                pl.BlockSpec((1, tn), lambda i, j, k: (0, j)),
            ],
            out_specs=pl.BlockSpec((tm, tn), lambda i, j, k: (i, j)),
            scratch_shapes=scratch,
        ),
        compiler_params=pltpu.CompilerParams(
            dimension_semantics=("parallel", "parallel", "arbitrary"),
            vmem_limit_bytes=vmem_limit,
        ),
        cost_estimate=cost,
    )(x_p, w_p, b_p)

    if M_pad == M and N_pad == N:
        return y_p
    return y_p[:M, :N]


def linear_forward(x, w, b):
    """y = x @ w.T + b with PyTorch nn.Linear conventions.

    x: [M, K], w: [N, K], b: [N]  ->  y: [M, N]
    """
    M, K = x.shape
    N = w.shape[0]
    # Tiny layers (this model's nn.Linear(2, 1)): single-block VPU kernel.
    if N <= 8 and K <= 256 and M <= 1024:
        return _linear_small(x, w, b)
    # Large layers: canonical tiled MXU matmul.
    return _linear_tiled(x, w, b)


if __name__ == "__main__":
    key = jax.random.PRNGKey(0)
    kx, kw, kb = jax.random.split(key, 3)

    # CustomModel: nn.Linear(2, 1) -> W: [1, 2], b: [1]
    batch = 8
    in_features, out_features = 2, 1

    x = jax.random.normal(kx, (batch, in_features), dtype=jnp.float32)
    w = jax.random.normal(kw, (out_features, in_features), dtype=jnp.float32) * 0.5
    b = jax.random.normal(kb, (out_features,), dtype=jnp.float32) * 0.1

    y = jax.block_until_ready(linear_forward(x, w, b))

    # Reference (same semantics as torch nn.Linear forward).
    y_ref = x @ w.T + b
    assert y.shape == (batch, out_features)
    assert jnp.allclose(y, y_ref, atol=1e-5, rtol=1e-5)

    print("KERNEL_OK")
</pallas_src>

<mosaic_0001>
module attributes {stable_mosaic.version = 11 : i64} {
  func.func @_small_linear_kernel(%arg0: memref<8x2xf32, #tpu.memory_space<vmem>>, %arg1: memref<1x2xf32, #tpu.memory_space<vmem>>, %arg2: memref<1xf32, #tpu.memory_space<smem>>, %arg3: memref<8x1xf32, #tpu.memory_space<vmem>>) attributes {dimension_semantics = [], scalar_prefetch = 0 : i64, scratch_operands = 0 : i64, tpu.core_type = #tpu.core_type<tc>} {
    %c0 = arith.constant 0 : index
    %c0_0 = arith.constant 0 : index
    %0 = vector.load %arg0[%c0, %c0_0] : memref<8x2xf32, #tpu.memory_space<vmem>>, vector<8x2xf32>
    %c0_1 = arith.constant 0 : index
    %c0_2 = arith.constant 0 : index
    %1 = vector.load %arg1[%c0_1, %c0_2] : memref<1x2xf32, #tpu.memory_space<vmem>>, vector<1x2xf32>
    %2 = vector.broadcast %1 : vector<1x2xf32> to vector<8x2xf32>
    %3 = arith.mulf %0, %2 : vector<8x2xf32>
    %cst = arith.constant dense<0.000000e+00> : vector<8xf32>
    %4 = vector.multi_reduction <add>, %3, %cst [1] : vector<8x2xf32> to vector<8xf32>
    %5 = vector.shape_cast %4 : vector<8xf32> to vector<8x1xf32>
    %c0_3 = arith.constant 0 : index
    %6 = memref.load %arg2[%c0_3] : memref<1xf32, #tpu.memory_space<smem>>
    %7 = vector.broadcast %6 : f32 to vector<8x1xf32>
    %8 = arith.addf %5, %7 : vector<8x1xf32>
    %c0_4 = arith.constant 0 : index
    %c0_5 = arith.constant 0 : index
    %9 = vector.load %arg3[%c0_4, %c0_5] : memref<8x1xf32, #tpu.memory_space<vmem>>, vector<8x1xf32>
    tpu.vector_store %arg3[%c0_4, %c0_5], %8 {strides = array<i32>} : memref<8x1xf32, #tpu.memory_space<vmem>>, vector<8x1xf32>,
    return
  }
}

</mosaic_0001>

<llo_original>
// kernel: tpu_custom_call.1
$region0: #{tpu_custom_call.1}
  #allocation0 [shape = 'u32[]', space=smem, size = 0x4, offset = 0x4, fixed_abs, tag = 'smem constant byte address 0x4 - core index']
  #allocation1 [shape = 'u32[72,128]{1,0:T(1,128)}', space=vmem, size = 0x9000, scoped, tag = 'internal scratch']
  #allocation2 [shape = 'f32[1]{0:T(128)S(6)}', space=smem, size = 0x200, scoped, tag = 'scoped memory for tpu_custom_call.1']
  %s0 = inlined_call_operand.vmem [shape: f32[8,2], index: 0, kind: input, shape index: {}]
  %s1 = inlined_call_operand.vmem [shape: f32[1,2], index: 1, kind: input, shape index: {}]
  %s2 = inlined_call_operand.<no memory space> [shape: f32[1], index: 2, kind: input, shape index: {}]
  %s3 = inlined_call_operand.vmem [shape: f32[8,1], index: 3, kind: output, shape index: {}]
  %s4 = sld [smem:[#allocation0]]
  $region22: #{tpu_custom_call.1} parent=0
    _
  %s6 = ssub.s32 1, %s4
  %s7 = scalar_select 0, %s6, %s4
  %8 = sst [smem:[#allocation2]] %s2
  // Predicated region
  $region2: #{tpu_custom_call.1} parent=0 // pred_check
    _
  $region3: #{tpu_custom_call.1} parent=0 // pred_check_branch
    %10 = sbr.rel (0) target = $region5
  $region4: #{tpu_custom_call.1} parent=0 // pred_region
    _
  $region5: #{tpu_custom_call.1} parent=0 // pred_fallthru
    _
  // Predicated region
  $region6: #{tpu_custom_call.1} parent=0 // pred_check
    _
  $region7: #{tpu_custom_call.1} parent=0 // pred_check_branch
    %12 = sbr.rel (0) target = $region9
  $region8: #{tpu_custom_call.1} parent=0 // pred_region
    _
  $region9: #{tpu_custom_call.1} parent=0 // pred_fallthru
    _
  // Predicated region
  $region10: #{tpu_custom_call.1} parent=0 // pred_check
    _
  $region11: #{tpu_custom_call.1} parent=0 // pred_check_branch
    %14 = sbr.rel (0) target = $region13
  $region12: #{tpu_custom_call.1} parent=0 // pred_region
    _
  $region13: #{tpu_custom_call.1} parent=0 // pred_fallthru
    _
  %v15 = vld [vmem:[%s0] sm:$0xff]
  %v16 = vld [vmem:[%s1] sm:$0x1]
  %v18 = vperm.slane %v16, 0
  %v20 = vmul.f32 %v15, %v18
  %vm21 = vcmask 15360
  %v22 = vsel %vm21, %v20, 0.0
  %23 = vadd.xlane.f32.xlu0 %v22
  %v24 = vpop.xlane.xlu0 %23
  %s25 = sld [smem:[#allocation2]]
  %v26 = vstv %s25
  %v27 = vadd.f32 %v24, %v26
  %vm28 = vcmask 7168
  %29 = vst.msk [vmem:[%s3] sm:$0xff] %vm28, %v27
  // Predicated region
  $region14: #{tpu_custom_call.1} parent=0 // pred_check
    _
  $region15: #{tpu_custom_call.1} parent=0 // pred_check_branch
    %31 = sbr.rel (0) target = $region17
  $region16: #{tpu_custom_call.1} parent=0 // pred_region
    _
  $region17: #{tpu_custom_call.1} parent=0 // pred_fallthru
    _
  // Predicated region
  $region18: #{tpu_custom_call.1} parent=0 // pred_check
    _
  $region19: #{tpu_custom_call.1} parent=0 // pred_check_branch
    %33 = sbr.rel (0) target = $region21
  $region20: #{tpu_custom_call.1} parent=0 // pred_region
    _
  $region21: #{tpu_custom_call.1} parent=0 // pred_fallthru
    _

</llo_original>
